<compile_context>
chip_gen: v7x
topology: tpu7x:2x2x1
jax: 0.10.0
libtpu: 0.0.40
codegen_flags: <defaults>
</compile_context>

<pallas_src>
import jax
import jax.numpy as jnp
from jax.experimental import pallas as pl
from jax.experimental.pallas import tpu as pltpu


def _round_up(x, m):
    return ((x + m - 1) // m) * m


def trilinear_kernel(rl_ref, ob_ref, sub_ref,
                     wr_ref, br_ref, wo_ref, bo_ref, ws_ref, bs_ref,
                     we_ref, be_ref, out_ref):
    # Three input projections on the MXU, f32 accumulation; biases are f32.
    r = jnp.dot(rl_ref[...], wr_ref[...], preferred_element_type=jnp.float32) + br_ref[...]
    o = jnp.dot(ob_ref[...], wo_ref[...], preferred_element_type=jnp.float32) + bo_ref[...]
    s = jnp.dot(sub_ref[...], ws_ref[...], preferred_element_type=jnp.float32) + bs_ref[...]

    # Hadamard fuse in f32 (VPU), cast to the MXU operand dtype (bf16 on
    # v6e/v7x when compute_dtype=bf16) for the output projection.
    fused = (r * o * s).astype(we_ref.dtype)
    a = jnp.dot(fused, we_ref[...], preferred_element_type=jnp.float32) + be_ref[...]
    a = jnp.maximum(a, 0.0)

    # Residual uses the *projected* rl stream (matches the PyTorch code).
    out_ref[...] = (r + a).astype(out_ref.dtype)


def trilinear(rl_feat, ob_feat, sub_feat, params, *, tile_n=256,
              compute_dtype=None, vmem_limit_bytes=48 * 1024 * 1024):
    """params: dict with wr, br, wo, bo, ws, bs, we, be.

    Weights are [in_dim, out_dim]; biases are [1, out_dim].
    compute_dtype: dtype for MXU operands (e.g. jnp.bfloat16 on v6e/v7x);
    accumulation is always f32. Output dtype matches rl_feat.dtype.
    """
    N, D = rl_feat.shape
    H = params["wr"].shape[1]
    assert params["we"].shape == (H, D)
    assert H == D, (
        "TriLinear residual (rl_feat + atten_f) requires hidden_dim == input_dim")

    out_dtype = rl_feat.dtype
    mxu_dtype = jnp.dtype(compute_dtype) if compute_dtype is not None else jnp.dtype(out_dtype)

    # ---- pad feature dims to lane multiples (128) for lane-dense blocks ----
    Dp = _round_up(D, 128)
    Hp = _round_up(H, 128)

    # ---- pick the row tile; keep >= 2 grid steps when possible (v7x 2 TCs) --
    tile = max(8, min(tile_n, _round_up(N, 8)))
    if _round_up(N, tile) // tile < 2 and N > 8:
        tile = max(8, _round_up(pl.cdiv(N, 2), 8))
    Np = _round_up(N, tile)
    grid_n = Np // tile

    def pad2(x, rows, cols, dtype):
        x = x.astype(dtype)
        return jnp.pad(x, ((0, rows - x.shape[0]), (0, cols - x.shape[1])))

    # Zero-padding is semantics-preserving: padded hidden/output columns get
    # zero weights + zero bias, so r/o/s/a are zero there and sliced away.
    rl_p = pad2(rl_feat, Np, Dp, mxu_dtype)
    ob_p = pad2(ob_feat, Np, Dp, mxu_dtype)
    sub_p = pad2(sub_feat, Np, Dp, mxu_dtype)
    wr_p = pad2(params["wr"], Dp, Hp, mxu_dtype)
    wo_p = pad2(params["wo"], Dp, Hp, mxu_dtype)
    ws_p = pad2(params["ws"], Dp, Hp, mxu_dtype)
    we_p = pad2(params["we"], Hp, Dp, mxu_dtype)
    br_p = pad2(params["br"], 1, Hp, jnp.float32)
    bo_p = pad2(params["bo"], 1, Hp, jnp.float32)
    bs_p = pad2(params["bs"], 1, Hp, jnp.float32)
    be_p = pad2(params["be"], 1, Dp, jnp.float32)

    row_spec = pl.BlockSpec((tile, Dp), lambda i: (i, 0))
    out_spec = pl.BlockSpec((tile, Dp), lambda i: (i, 0))
    # Weights / biases are resident (constant index_map) across the grid.
    w_dh = pl.BlockSpec((Dp, Hp), lambda i: (0, 0))
    b_h = pl.BlockSpec((1, Hp), lambda i: (0, 0))
    w_hd = pl.BlockSpec((Hp, Dp), lambda i: (0, 0))
    b_d = pl.BlockSpec((1, Dp), lambda i: (0, 0))

    itemsize = jnp.dtype(mxu_dtype).itemsize
    cost = pl.CostEstimate(
        flops=8 * Np * Dp * Hp,  # 3x (Np,Dp)@(Dp,Hp) + 1x (Np,Hp)@(Hp,Dp)
        transcendentals=0,
        bytes_accessed=(3 * Np * Dp + 4 * Dp * Hp) * itemsize
        + (3 * Hp + Dp) * 4
        + Np * Dp * jnp.dtype(out_dtype).itemsize,
    )

    out_p = pl.pallas_call(
        trilinear_kernel,
        out_shape=jax.ShapeDtypeStruct((Np, Dp), out_dtype),
        grid_spec=pltpu.PrefetchScalarGridSpec(
            num_scalar_prefetch=0,
            grid=(grid_n,),
            in_specs=[row_spec, row_spec, row_spec,
                      w_dh, b_h, w_dh, b_h, w_dh, b_h,
                      w_hd, b_d],
            out_specs=out_spec,
        ),
        compiler_params=pltpu.CompilerParams(
            dimension_semantics=("parallel",),
            vmem_limit_bytes=vmem_limit_bytes,
        ),
        cost_estimate=cost,
    )(rl_p, ob_p, sub_p,
      wr_p, br_p, wo_p, bo_p, ws_p, bs_p, we_p, be_p)

    return out_p[:N, :D]


def trilinear_ref(rl, ob, sub, p):
    r = rl @ p["wr"] + p["br"]
    o = ob @ p["wo"] + p["bo"]
    s = sub @ p["ws"] + p["bs"]
    a = jax.nn.relu((r * o * s) @ p["we"] + p["be"])
    return r + a


def init_params(key, input_dim, hidden_dim):
    # Deterministic synthetic init (uniform, nn.Linear-style bound).
    ks = jax.random.split(key, 8)

    def lin(kw, kb, fan_in, fan_out):
        bound = 1.0 / jnp.sqrt(fan_in)
        w = jax.random.uniform(kw, (fan_in, fan_out), jnp.float32, -bound, bound)
        b = jax.random.uniform(kb, (1, fan_out), jnp.float32, -bound, bound)
        return w, b

    wr, br = lin(ks[0], ks[1], input_dim, hidden_dim)
    wo, bo = lin(ks[2], ks[3], input_dim, hidden_dim)
    ws, bs = lin(ks[4], ks[5], input_dim, hidden_dim)
    we, be = lin(ks[6], ks[7], hidden_dim, input_dim)
    return dict(wr=wr, br=br, wo=wo, bo=bo, ws=ws, bs=bs, we=we, be=be)


if __name__ == "__main__":
    # hidden_dim must equal input_dim for the residual add (as the PyTorch
    # forward requires implicitly).
    input_dim = 32
    hidden_dim = 32
    N = 16  # number of "tokens" (e.g. flattened batch*seq)

    key = jax.random.PRNGKey(0)
    k_rl, k_ob, k_sub, k_p = jax.random.split(key, 4)
    rl = jax.random.normal(k_rl, (N, input_dim), jnp.float32)
    ob = jax.random.normal(k_ob, (N, input_dim), jnp.float32)
    sub = jax.random.normal(k_sub, (N, input_dim), jnp.float32)
    params = init_params(k_p, input_dim, hidden_dim)

    ref = trilinear_ref(rl, ob, sub, params)

    # f32 MXU operands: bitwise-close to the reference.
    out_f32 = jax.block_until_ready(trilinear(rl, ob, sub, params))
    assert out_f32.shape == (N, input_dim)
    assert jnp.allclose(out_f32, ref, atol=1e-5, rtol=1e-5)

    # bf16 MXU operands (the v6e/v7x fast path): f32 accumulation, looser tol.
    out_bf16 = jax.block_until_ready(
        trilinear(rl, ob, sub, params, compute_dtype=jnp.bfloat16))
    assert out_bf16.shape == (N, input_dim)
    assert jnp.allclose(out_bf16, ref, atol=5e-2, rtol=5e-2)

    print("KERNEL_OK")
</pallas_src>

<mosaic_0001>
module attributes {stable_mosaic.version = 11 : i64} {
  func.func @trilinear_kernel(%arg0: i32, %arg1: memref<8x128xf32, #tpu.memory_space<vmem>>, %arg2: memref<8x128xf32, #tpu.memory_space<vmem>>, %arg3: memref<8x128xf32, #tpu.memory_space<vmem>>, %arg4: memref<128x128xf32, #tpu.memory_space<vmem>>, %arg5: memref<1x128xf32, #tpu.memory_space<vmem>>, %arg6: memref<128x128xf32, #tpu.memory_space<vmem>>, %arg7: memref<1x128xf32, #tpu.memory_space<vmem>>, %arg8: memref<128x128xf32, #tpu.memory_space<vmem>>, %arg9: memref<1x128xf32, #tpu.memory_space<vmem>>, %arg10: memref<128x128xf32, #tpu.memory_space<vmem>>, %arg11: memref<1x128xf32, #tpu.memory_space<vmem>>, %arg12: memref<8x128xf32, #tpu.memory_space<vmem>>) attributes {dimension_semantics = [#tpu.dimension_semantics<parallel>], iteration_bounds = array<i64: 2>, scalar_prefetch = 0 : i64, scratch_operands = 0 : i64, tpu.core_type = #tpu.core_type<tc>, window_params = [{transform_indices = @transform_0, window_bounds = array<i64: 8, 128>}, {transform_indices = @transform_1, window_bounds = array<i64: 8, 128>}, {transform_indices = @transform_2, window_bounds = array<i64: 8, 128>}, {pipeline_mode = #tpu.pipeline_mode<synchronous>, transform_indices = @transform_3, window_bounds = array<i64: 128, 128>}, {pipeline_mode = #tpu.pipeline_mode<synchronous>, transform_indices = @transform_4, window_bounds = array<i64: 1, 128>}, {pipeline_mode = #tpu.pipeline_mode<synchronous>, transform_indices = @transform_5, window_bounds = array<i64: 128, 128>}, {pipeline_mode = #tpu.pipeline_mode<synchronous>, transform_indices = @transform_6, window_bounds = array<i64: 1, 128>}, {pipeline_mode = #tpu.pipeline_mode<synchronous>, transform_indices = @transform_7, window_bounds = array<i64: 128, 128>}, {pipeline_mode = #tpu.pipeline_mode<synchronous>, transform_indices = @transform_8, window_bounds = array<i64: 1, 128>}, {pipeline_mode = #tpu.pipeline_mode<synchronous>, transform_indices = @transform_9, window_bounds = array<i64: 128, 128>}, {pipeline_mode = #tpu.pipeline_mode<synchronous>, transform_indices = @transform_10, window_bounds = array<i64: 1, 128>}, {transform_indices = @transform_11, window_bounds = array<i64: 8, 128>}]} {
    %c0 = arith.constant 0 : index
    %c0_0 = arith.constant 0 : index
    %0 = vector.load %arg1[%c0, %c0_0] : memref<8x128xf32, #tpu.memory_space<vmem>>, vector<8x128xf32>
    %c0_1 = arith.constant 0 : index
    %c0_2 = arith.constant 0 : index
    %1 = vector.load %arg4[%c0_1, %c0_2] : memref<128x128xf32, #tpu.memory_space<vmem>>, vector<128x128xf32>
    %cst = arith.constant dense<0.000000e+00> : vector<8x128xf32>
    %2 = tpu.matmul %0, %1, %cst {dimension_numbers = #tpu.dot_dimension_numbers<[1], [0], [0], [1], [0, 0, 1, 1], [], []>} : vector<8x128xf32>, vector<128x128xf32>, vector<8x128xf32> -> vector<8x128xf32>
    %c0_3 = arith.constant 0 : index
    %c0_4 = arith.constant 0 : index
    %3 = vector.load %arg5[%c0_3, %c0_4] : memref<1x128xf32, #tpu.memory_space<vmem>>, vector<1x128xf32>
    %4 = vector.broadcast %3 : vector<1x128xf32> to vector<8x128xf32>
    %5 = arith.addf %2, %4 : vector<8x128xf32>
    %c0_5 = arith.constant 0 : index
    %c0_6 = arith.constant 0 : index
    %6 = vector.load %arg2[%c0_5, %c0_6] : memref<8x128xf32, #tpu.memory_space<vmem>>, vector<8x128xf32>
    %c0_7 = arith.constant 0 : index
    %c0_8 = arith.constant 0 : index
    %7 = vector.load %arg6[%c0_7, %c0_8] : memref<128x128xf32, #tpu.memory_space<vmem>>, vector<128x128xf32>
    %cst_9 = arith.constant dense<0.000000e+00> : vector<8x128xf32>
    %8 = tpu.matmul %6, %7, %cst_9 {dimension_numbers = #tpu.dot_dimension_numbers<[1], [0], [0], [1], [0, 0, 1, 1], [], []>} : vector<8x128xf32>, vector<128x128xf32>, vector<8x128xf32> -> vector<8x128xf32>
    %c0_10 = arith.constant 0 : index
    %c0_11 = arith.constant 0 : index
    %9 = vector.load %arg7[%c0_10, %c0_11] : memref<1x128xf32, #tpu.memory_space<vmem>>, vector<1x128xf32>
    %10 = vector.broadcast %9 : vector<1x128xf32> to vector<8x128xf32>
    %11 = arith.addf %8, %10 : vector<8x128xf32>
    %c0_12 = arith.constant 0 : index
    %c0_13 = arith.constant 0 : index
    %12 = vector.load %arg3[%c0_12, %c0_13] : memref<8x128xf32, #tpu.memory_space<vmem>>, vector<8x128xf32>
    %c0_14 = arith.constant 0 : index
    %c0_15 = arith.constant 0 : index
    %13 = vector.load %arg8[%c0_14, %c0_15] : memref<128x128xf32, #tpu.memory_space<vmem>>, vector<128x128xf32>
    %cst_16 = arith.constant dense<0.000000e+00> : vector<8x128xf32>
    %14 = tpu.matmul %12, %13, %cst_16 {dimension_numbers = #tpu.dot_dimension_numbers<[1], [0], [0], [1], [0, 0, 1, 1], [], []>} : vector<8x128xf32>, vector<128x128xf32>, vector<8x128xf32> -> vector<8x128xf32>
    %c0_17 = arith.constant 0 : index
    %c0_18 = arith.constant 0 : index
    %15 = vector.load %arg9[%c0_17, %c0_18] : memref<1x128xf32, #tpu.memory_space<vmem>>, vector<1x128xf32>
    %16 = vector.broadcast %15 : vector<1x128xf32> to vector<8x128xf32>
    %17 = arith.addf %14, %16 : vector<8x128xf32>
    %18 = arith.mulf %5, %11 : vector<8x128xf32>
    %19 = arith.mulf %18, %17 : vector<8x128xf32>
    %c0_19 = arith.constant 0 : index
    %c0_20 = arith.constant 0 : index
    %20 = vector.load %arg10[%c0_19, %c0_20] : memref<128x128xf32, #tpu.memory_space<vmem>>, vector<128x128xf32>
    %cst_21 = arith.constant dense<0.000000e+00> : vector<8x128xf32>
    %21 = tpu.matmul %19, %20, %cst_21 {dimension_numbers = #tpu.dot_dimension_numbers<[1], [0], [0], [1], [0, 0, 1, 1], [], []>} : vector<8x128xf32>, vector<128x128xf32>, vector<8x128xf32> -> vector<8x128xf32>
    %c0_22 = arith.constant 0 : index
    %c0_23 = arith.constant 0 : index
    %22 = vector.load %arg11[%c0_22, %c0_23] : memref<1x128xf32, #tpu.memory_space<vmem>>, vector<1x128xf32>
    %23 = vector.broadcast %22 : vector<1x128xf32> to vector<8x128xf32>
    %24 = arith.addf %21, %23 : vector<8x128xf32>
    %cst_24 = arith.constant 0.000000e+00 : f32
    %25 = vector.broadcast %cst_24 : f32 to vector<8x128xf32>
    %26 = arith.maximumf %24, %25 : vector<8x128xf32>
    %27 = arith.addf %5, %26 : vector<8x128xf32>
    %c0_25 = arith.constant 0 : index
    %c0_26 = arith.constant 0 : index
    %28 = vector.load %arg12[%c0_25, %c0_26] : memref<8x128xf32, #tpu.memory_space<vmem>>, vector<8x128xf32>
    tpu.vector_store %arg12[%c0_25, %c0_26], %27 {strides = array<i32>} : memref<8x128xf32, #tpu.memory_space<vmem>>, vector<8x128xf32>,
    return
  }
  func.func @transform_0(%arg0: i32) -> (i32, i32) {
    %c0_i32 = arith.constant 0 : i32
    %c0_i32_0 = arith.constant 0 : i32
    return %arg0, %c0_i32 : i32, i32
  }
  func.func @transform_1(%arg0: i32) -> (i32, i32) {
    %c0_i32 = arith.constant 0 : i32
    %c0_i32_0 = arith.constant 0 : i32
    return %arg0, %c0_i32 : i32, i32
  }
  func.func @transform_2(%arg0: i32) -> (i32, i32) {
    %c0_i32 = arith.constant 0 : i32
    %c0_i32_0 = arith.constant 0 : i32
    return %arg0, %c0_i32 : i32, i32
  }
  func.func @transform_3(%arg0: i32) -> (i32, i32) {
    %c0_i32 = arith.constant 0 : i32
    %c0_i32_0 = arith.constant 0 : i32
    %c0_i32_1 = arith.constant 0 : i32
    return %c0_i32, %c0_i32_0 : i32, i32
  }
  func.func @transform_4(%arg0: i32) -> (i32, i32) {
    %c0_i32 = arith.constant 0 : i32
    %c0_i32_0 = arith.constant 0 : i32
    %c0_i32_1 = arith.constant 0 : i32
    return %c0_i32, %c0_i32_0 : i32, i32
  }
  func.func @transform_5(%arg0: i32) -> (i32, i32) {
    %c0_i32 = arith.constant 0 : i32
    %c0_i32_0 = arith.constant 0 : i32
    %c0_i32_1 = arith.constant 0 : i32
    return %c0_i32, %c0_i32_0 : i32, i32
  }
  func.func @transform_6(%arg0: i32) -> (i32, i32) {
    %c0_i32 = arith.constant 0 : i32
    %c0_i32_0 = arith.constant 0 : i32
    %c0_i32_1 = arith.constant 0 : i32
    return %c0_i32, %c0_i32_0 : i32, i32
  }
  func.func @transform_7(%arg0: i32) -> (i32, i32) {
    %c0_i32 = arith.constant 0 : i32
    %c0_i32_0 = arith.constant 0 : i32
    %c0_i32_1 = arith.constant 0 : i32
    return %c0_i32, %c0_i32_0 : i32, i32
  }
  func.func @transform_8(%arg0: i32) -> (i32, i32) {
    %c0_i32 = arith.constant 0 : i32
    %c0_i32_0 = arith.constant 0 : i32
    %c0_i32_1 = arith.constant 0 : i32
    return %c0_i32, %c0_i32_0 : i32, i32
  }
  func.func @transform_9(%arg0: i32) -> (i32, i32) {
    %c0_i32 = arith.constant 0 : i32
    %c0_i32_0 = arith.constant 0 : i32
    %c0_i32_1 = arith.constant 0 : i32
    return %c0_i32, %c0_i32_0 : i32, i32
  }
  func.func @transform_10(%arg0: i32) -> (i32, i32) {
    %c0_i32 = arith.constant 0 : i32
    %c0_i32_0 = arith.constant 0 : i32
    %c0_i32_1 = arith.constant 0 : i32
    return %c0_i32, %c0_i32_0 : i32, i32
  }
  func.func @transform_11(%arg0: i32) -> (i32, i32) {
    %c0_i32 = arith.constant 0 : i32
    %c0_i32_0 = arith.constant 0 : i32
    return %arg0, %c0_i32 : i32, i32
  }
}

</mosaic_0001>

<llo_original>
// kernel: tpu_custom_call.1
$region0: #{tpu_custom_call.1}
  #allocation0 [shape = 'u32[]', space=smem, size = 0x4, offset = 0x4, fixed_abs, tag = 'smem constant byte address 0x4 - core index']
  #allocation1 [shape = 'u32[144,128]{1,0:T(1,128)}', space=vmem, size = 0x12000, scoped, tag = 'internal scratch']
  %s0 = inlined_call_operand.hbm [shape: f32[16,128], index: 0, kind: input, shape index: {}]
  %s1 = inlined_call_operand.hbm [shape: f32[16,128], index: 1, kind: input, shape index: {}]
  %s2 = inlined_call_operand.hbm [shape: f32[16,128], index: 2, kind: input, shape index: {}]
  %s3 = inlined_call_operand.hbm [shape: f32[128,128], index: 3, kind: input, shape index: {}]
  %s4 = inlined_call_operand.vmem [shape: f32[1,128], index: 4, kind: input, shape index: {}]
  %s5 = inlined_call_operand.hbm [shape: f32[128,128], index: 5, kind: input, shape index: {}]
  %s6 = inlined_call_operand.vmem [shape: f32[1,128], index: 6, kind: input, shape index: {}]
  %s7 = inlined_call_operand.hbm [shape: f32[128,128], index: 7, kind: input, shape index: {}]
  %s8 = inlined_call_operand.vmem [shape: f32[1,128], index: 8, kind: input, shape index: {}]
  %s9 = inlined_call_operand.hbm [shape: f32[128,128], index: 9, kind: input, shape index: {}]
  %s10 = inlined_call_operand.vmem [shape: f32[1,128], index: 10, kind: input, shape index: {}]
  %s11 = inlined_call_operand.hbm [shape: f32[16,128], index: 11, kind: output, shape index: {}]
  %s12 = sld [smem:[#allocation0]]
  $region105: #{tpu_custom_call.1} parent=0
    _
  %s14 = ssub.s32 1, %s12
  %s15 = scalar_select 0, %s14, %s12
  $region1: #{tpu_custom_call.1} parent=0
    #allocation2 [shape = 'u8[8192]{0}', space=vmem, size = 0x2000, scoped, tag = 'input window, operand 0']
    #allocation3 [shape = 's32[2]{0}', space=sflag, size = 0x8, scoped, tag = 'scoped memory for tpu_custom_call.1']
    #allocation4 [shape = 's32[2]{0}', space=sflag, size = 0x8, scoped, tag = 'scoped memory for tpu_custom_call.1']
    #allocation5 [shape = 'u8[8192]{0}', space=vmem, size = 0x2000, scoped, tag = 'input window, operand 1']
    #allocation6 [shape = 's32[2]{0}', space=sflag, size = 0x8, scoped, tag = 'scoped memory for tpu_custom_call.1']
    #allocation7 [shape = 'u8[8192]{0}', space=vmem, size = 0x2000, scoped, tag = 'input window, operand 2']
    #allocation8 [shape = 'u8[65536]{0}', space=vmem, size = 0x10000, scoped, tag = 'input window, operand 3, single buffered']
    #allocation9 [shape = 's32[1]{0}', space=sflag, size = 0x4, scoped, tag = 'scoped memory for tpu_custom_call.1']
    #allocation10 [shape = 'u8[65536]{0}', space=vmem, size = 0x10000, scoped, tag = 'input window, operand 5, single buffered']
    #allocation11 [shape = 'u8[65536]{0}', space=vmem, size = 0x10000, scoped, tag = 'input window, operand 7, single buffered']
    #allocation12 [shape = 's32[1]{0}', space=sflag, size = 0x4, scoped, tag = 'scoped memory for tpu_custom_call.1']
    #allocation13 [shape = 'u8[65536]{0}', space=vmem, size = 0x10000, scoped, tag = 'input window, operand 9, single buffered']
    #allocation14 [shape = 'u8[8192]{0}', space=vmem, size = 0x2000, scoped, tag = 'output window, operand 0']
    %16 = vsyncpa [#allocation3], 0
    %s17 = scalar_lea.sflag [#allocation3], 1
    %18 = vsyncpa %s17, 0
    %19 = vsyncpa [#allocation6], 0
    %s20 = scalar_lea.sflag [#allocation6], 1
    %21 = vsyncpa %s20, 0
    %22 = vsyncpa [#allocation9], 0
    %23 = vsyncpa [#allocation12], 0
    %24 = vsyncpa [#allocation4], 0
    %s25 = scalar_lea.sflag [#allocation4], 1
    %26 = vsyncpa %s25, 0
    loop: start=0, step=1, limit=4
    $region2: #{tpu_custom_call.1} parent=1 // loop_pre_header
      _
    $region3: #{tpu_custom_call.1} parent=1 // loop_header
      %s28 = sphi 0, %s32
      %p29 = scmp.ge.s32.totalorder %s28, 4
      %s38 = sphi 0, %s40
      %s41 = sphi 0, %s38
      %s42 = sphi 0, %s41
      %s58 = sphi 0, %s42
      %s64 = sphi 0, %s66
      %s67 = sphi 0, %s64
      %s68 = sphi 0, %s67
      %s84 = sphi 0, %s68
      %s90 = sphi 0, %s92
      %s93 = sphi 0, %s90
      %s94 = sphi 0, %s93
      %s110 = sphi 0, %s94
      %s114 = sphi 0, %s114
      %s116 = sphi 0, %s114
      %s117 = sphi 0, %s116
      %s131 = sphi 0, %s117
      %s135 = sphi 0, %s135
      %s137 = sphi 0, %s135
      %s138 = sphi 0, %s137
      %s152 = sphi 0, %s138
      %s156 = sphi 0, %s156
      %s158 = sphi 0, %s156
      %s159 = sphi 0, %s158
      %s173 = sphi 0, %s159
      %s177 = sphi 0, %s177
      %s179 = sphi 0, %s177
      %s180 = sphi 0, %s179
      %s194 = sphi 0, %s180
      %s198 = sphi 0, %s198
      %s200 = sphi 0, %s198
      %s201 = sphi 0, %s200
      %s215 = sphi 0, %s201
      %s219 = sphi 0, %s219
      %s221 = sphi 0, %s219
      %s222 = sphi 0, %s221
      %s236 = sphi 0, %s222
      %s240 = sphi 0, %s240
      %s242 = sphi 0, %s240
      %s243 = sphi 0, %s242
      %s257 = sphi 0, %s243
      %s261 = sphi 0, %s261
      %s263 = sphi 0, %s261
      %s264 = sphi 0, %s263
      %s278 = sphi 0, %s264
      %s284 = sphi 0, %s286
      %s287 = sphi 0, %s284
      %s288 = sphi 0, %s287
      %s304 = sphi 0, %s288
    $region4: #{tpu_custom_call.1} parent=1 // loop_header_branch
      %31 = sbr.rel (%p29) target = $region8
    $region5: #{tpu_custom_call.1} parent=1 // loop_body
      %s33 = ssub.s32 %s28, 1
      %s34 = ssub.s32 %s28, 2
      %s35 = sadd.s32 %s28, 1
      %s36 = ssub.s32 %s28, %s35
      %p37 = scmp.eq.s32.totalorder %s36, 0
      %s39 = sadd.s32 %s38, 1
      %s40 = scalar_select %p37, %s38, %s39
      %p43 = pneg %p37
      %p44 = scmp.eq.s32.totalorder %s28, 1
      %p45 = por %p43, %p44
      %p46 = scmp.ne.s32.totalorder %s38, %s41
      %p47 = scmp.eq.s32.totalorder %s28, 0
      %p48 = por %p46, %p47
      %p49 = scmp.ne.s32.totalorder %s38, %s41
      %p50 = scmp.eq.s32.totalorder %s33, 1
      %p51 = por %p49, %p50
      %p52 = scmp.ne.s32.totalorder %s41, %s42
      %p53 = scmp.eq.s32.totalorder %s33, 0
      %p54 = por %p52, %p53
      %p55 = scmp.ne.s32.totalorder %s41, %s42
      %p56 = scmp.eq.s32.totalorder %s34, 1
      %p57 = por %p55, %p56
      %p59 = scmp.ne.s32.totalorder %s42, %s58
      %p60 = scmp.eq.s32.totalorder %s34, 0
      %p61 = por %p59, %p60
      %s62 = ssub.s32 %s28, %s35
      %p63 = scmp.eq.s32.totalorder %s62, 0
      %s65 = sadd.s32 %s64, 1
      %s66 = scalar_select %p63, %s64, %s65
      %p69 = pneg %p63
      %p70 = scmp.eq.s32.totalorder %s28, 1
      %p71 = por %p69, %p70
      %p72 = scmp.ne.s32.totalorder %s64, %s67
      %p73 = scmp.eq.s32.totalorder %s28, 0
      %p74 = por %p72, %p73
      %p75 = scmp.ne.s32.totalorder %s64, %s67
      %p76 = scmp.eq.s32.totalorder %s33, 1
      %p77 = por %p75, %p76
      %p78 = scmp.ne.s32.totalorder %s67, %s68
      %p79 = scmp.eq.s32.totalorder %s33, 0
      %p80 = por %p78, %p79
      %p81 = scmp.ne.s32.totalorder %s67, %s68
      %p82 = scmp.eq.s32.totalorder %s34, 1
      %p83 = por %p81, %p82
      %p85 = scmp.ne.s32.totalorder %s68, %s84
      %p86 = scmp.eq.s32.totalorder %s34, 0
      %p87 = por %p85, %p86
      %s88 = ssub.s32 %s28, %s35
      %p89 = scmp.eq.s32.totalorder %s88, 0
      %s91 = sadd.s32 %s90, 1
      %s92 = scalar_select %p89, %s90, %s91
      %p95 = pneg %p89
      %p96 = scmp.eq.s32.totalorder %s28, 1
      %p97 = por %p95, %p96
      %p98 = scmp.ne.s32.totalorder %s90, %s93
      %p99 = scmp.eq.s32.totalorder %s28, 0
      %p100 = por %p98, %p99
      %p101 = scmp.ne.s32.totalorder %s90, %s93
      %p102 = scmp.eq.s32.totalorder %s33, 1
      %p103 = por %p101, %p102
      %p104 = scmp.ne.s32.totalorder %s93, %s94
      %p105 = scmp.eq.s32.totalorder %s33, 0
      %p106 = por %p104, %p105
      %p107 = scmp.ne.s32.totalorder %s93, %s94
      %p108 = scmp.eq.s32.totalorder %s34, 1
      %p109 = por %p107, %p108
      %p111 = scmp.ne.s32.totalorder %s94, %s110
      %p112 = scmp.eq.s32.totalorder %s34, 0
      %p113 = por %p111, %p112
      %s115 = sadd.s32 %s114, 1
      %p118 = scmp.eq.s32.totalorder %s28, 1
      %p119 = scmp.ne.s32.totalorder %s114, %s116
      %p120 = scmp.eq.s32.totalorder %s28, 0
      %p121 = por %p119, %p120
      %p122 = scmp.ne.s32.totalorder %s114, %s116
      %p123 = scmp.eq.s32.totalorder %s33, 1
      %p124 = por %p122, %p123
      %p125 = scmp.ne.s32.totalorder %s116, %s117
      %p126 = scmp.eq.s32.totalorder %s33, 0
      %p127 = por %p125, %p126
      %p128 = scmp.ne.s32.totalorder %s116, %s117
      %p129 = scmp.eq.s32.totalorder %s34, 1
      %p130 = por %p128, %p129
      %p132 = scmp.ne.s32.totalorder %s117, %s131
      %p133 = scmp.eq.s32.totalorder %s34, 0
      %p134 = por %p132, %p133
      %s136 = sadd.s32 %s135, 1
      %p139 = scmp.eq.s32.totalorder %s28, 1
      %p140 = scmp.ne.s32.totalorder %s135, %s137
      %p141 = scmp.eq.s32.totalorder %s28, 0
      %p142 = por %p140, %p141
      %p143 = scmp.ne.s32.totalorder %s135, %s137
      %p144 = scmp.eq.s32.totalorder %s33, 1
      %p145 = por %p143, %p144
      %p146 = scmp.ne.s32.totalorder %s137, %s138
      %p147 = scmp.eq.s32.totalorder %s33, 0
      %p148 = por %p146, %p147
      %p149 = scmp.ne.s32.totalorder %s137, %s138
      %p150 = scmp.eq.s32.totalorder %s34, 1
      %p151 = por %p149, %p150
      %p153 = scmp.ne.s32.totalorder %s138, %s152
      %p154 = scmp.eq.s32.totalorder %s34, 0
      %p155 = por %p153, %p154
      %s157 = sadd.s32 %s156, 1
      %p160 = scmp.eq.s32.totalorder %s28, 1
      %p161 = scmp.ne.s32.totalorder %s156, %s158
      %p162 = scmp.eq.s32.totalorder %s28, 0
      %p163 = por %p161, %p162
      %p164 = scmp.ne.s32.totalorder %s156, %s158
      %p165 = scmp.eq.s32.totalorder %s33, 1
      %p166 = por %p164, %p165
      %p167 = scmp.ne.s32.totalorder %s158, %s159
      %p168 = scmp.eq.s32.totalorder %s33, 0
      %p169 = por %p167, %p168
      %p170 = scmp.ne.s32.totalorder %s158, %s159
      %p171 = scmp.eq.s32.totalorder %s34, 1
      %p172 = por %p170, %p171
      %p174 = scmp.ne.s32.totalorder %s159, %s173
      %p175 = scmp.eq.s32.totalorder %s34, 0
      %p176 = por %p174, %p175
      %s178 = sadd.s32 %s177, 1
      %p181 = scmp.eq.s32.totalorder %s28, 1
      %p182 = scmp.ne.s32.totalorder %s177, %s179
      %p183 = scmp.eq.s32.totalorder %s28, 0
      %p184 = por %p182, %p183
      %p185 = scmp.ne.s32.totalorder %s177, %s179
      %p186 = scmp.eq.s32.totalorder %s33, 1
      %p187 = por %p185, %p186
      %p188 = scmp.ne.s32.totalorder %s179, %s180
      %p189 = scmp.eq.s32.totalorder %s33, 0
      %p190 = por %p188, %p189
      %p191 = scmp.ne.s32.totalorder %s179, %s180
      %p192 = scmp.eq.s32.totalorder %s34, 1
      %p193 = por %p191, %p192
      %p195 = scmp.ne.s32.totalorder %s180, %s194
      %p196 = scmp.eq.s32.totalorder %s34, 0
      %p197 = por %p195, %p196
      %s199 = sadd.s32 %s198, 1
      %p202 = scmp.eq.s32.totalorder %s28, 1
      %p203 = scmp.ne.s32.totalorder %s198, %s200
      %p204 = scmp.eq.s32.totalorder %s28, 0
      %p205 = por %p203, %p204
      %p206 = scmp.ne.s32.totalorder %s198, %s200
      %p207 = scmp.eq.s32.totalorder %s33, 1
      %p208 = por %p206, %p207
      %p209 = scmp.ne.s32.totalorder %s200, %s201
      %p210 = scmp.eq.s32.totalorder %s33, 0
      %p211 = por %p209, %p210
      %p212 = scmp.ne.s32.totalorder %s200, %s201
      %p213 = scmp.eq.s32.totalorder %s34, 1
      %p214 = por %p212, %p213
      %p216 = scmp.ne.s32.totalorder %s201, %s215
      %p217 = scmp.eq.s32.totalorder %s34, 0
      %p218 = por %p216, %p217
      %s220 = sadd.s32 %s219, 1
      %p223 = scmp.eq.s32.totalorder %s28, 1
      %p224 = scmp.ne.s32.totalorder %s219, %s221
      %p225 = scmp.eq.s32.totalorder %s28, 0
      %p226 = por %p224, %p225
      %p227 = scmp.ne.s32.totalorder %s219, %s221
      %p228 = scmp.eq.s32.totalorder %s33, 1
      %p229 = por %p227, %p228
      %p230 = scmp.ne.s32.totalorder %s221, %s222
      %p231 = scmp.eq.s32.totalorder %s33, 0
      %p232 = por %p230, %p231
      %p233 = scmp.ne.s32.totalorder %s221, %s222
      %p234 = scmp.eq.s32.totalorder %s34, 1
      %p235 = por %p233, %p234
      %p237 = scmp.ne.s32.totalorder %s222, %s236
      %p238 = scmp.eq.s32.totalorder %s34, 0
      %p239 = por %p237, %p238
      %s241 = sadd.s32 %s240, 1
      %p244 = scmp.eq.s32.totalorder %s28, 1
      %p245 = scmp.ne.s32.totalorder %s240, %s242
      %p246 = scmp.eq.s32.totalorder %s28, 0
      %p247 = por %p245, %p246
      %p248 = scmp.ne.s32.totalorder %s240, %s242
      %p249 = scmp.eq.s32.totalorder %s33, 1
      %p250 = por %p248, %p249
      %p251 = scmp.ne.s32.totalorder %s242, %s243
      %p252 = scmp.eq.s32.totalorder %s33, 0
      %p253 = por %p251, %p252
      %p254 = scmp.ne.s32.totalorder %s242, %s243
      %p255 = scmp.eq.s32.totalorder %s34, 1
      %p256 = por %p254, %p255
      %p258 = scmp.ne.s32.totalorder %s243, %s257
      %p259 = scmp.eq.s32.totalorder %s34, 0
      %p260 = por %p258, %p259
      %s262 = sadd.s32 %s261, 1
      %p265 = scmp.eq.s32.totalorder %s28, 1
      %p266 = scmp.ne.s32.totalorder %s261, %s263
      %p267 = scmp.eq.s32.totalorder %s28, 0
      %p268 = por %p266, %p267
      %p269 = scmp.ne.s32.totalorder %s261, %s263
      %p270 = scmp.eq.s32.totalorder %s33, 1
      %p271 = por %p269, %p270
      %p272 = scmp.ne.s32.totalorder %s263, %s264
      %p273 = scmp.eq.s32.totalorder %s33, 0
      %p274 = por %p272, %p273
      %p275 = scmp.ne.s32.totalorder %s263, %s264
      %p276 = scmp.eq.s32.totalorder %s34, 1
      %p277 = por %p275, %p276
      %p279 = scmp.ne.s32.totalorder %s264, %s278
      %p280 = scmp.eq.s32.totalorder %s34, 0
      %p281 = por %p279, %p280
      %s282 = ssub.s32 %s28, %s35
      %p283 = scmp.eq.s32.totalorder %s282, 0
      %s285 = sadd.s32 %s284, 1
      %s286 = scalar_select %p283, %s284, %s285
      %p289 = pneg %p283
      %p290 = scmp.eq.s32.totalorder %s28, 1
      %p291 = por %p289, %p290
      %p292 = scmp.ne.s32.totalorder %s284, %s287
      %p293 = scmp.eq.s32.totalorder %s28, 0
      %p294 = por %p292, %p293
      %p295 = scmp.ne.s32.totalorder %s284, %s287
      %p296 = scmp.eq.s32.totalorder %s33, 1
      %p297 = por %p295, %p296
      %p298 = scmp.ne.s32.totalorder %s287, %s288
      %p299 = scmp.eq.s32.totalorder %s33, 0
      %p300 = por %p298, %p299
      %p301 = scmp.ne.s32.totalorder %s287, %s288
      %p302 = scmp.eq.s32.totalorder %s34, 1
      %p303 = por %p301, %p302
      %p305 = scmp.ne.s32.totalorder %s288, %s304
      %p306 = scmp.eq.s32.totalorder %s34, 0
      %p307 = por %p305, %p306
      %p308 = scmp.le.s32.totalorder 1, %s28
      %p309 = scmp.lt.s32.totalorder %s28, 3
      %p310 = pnand %p308, %p309
      %p311 = pneg %p310
      // Predicated region
      $region9: #{tpu_custom_call.1} parent=5 // pred_check
        _
      $region10: #{tpu_custom_call.1} parent=5 // pred_check_branch
        %313 = sbr.rel (%p310) target = $region12
      $region11: #{tpu_custom_call.1} parent=5 // pred_region
        %s314 = ssub.s32 %s28, 1
        // Predicated region
        $region13: #{tpu_custom_call.1} parent=11 // pred_check
          %p315 = pneg %p127
        $region14: #{tpu_custom_call.1} parent=11 // pred_check_branch
          %317 = sbr.rel (%p315) target = $region16
        $region15: #{tpu_custom_call.1} parent=11 // pred_region
          %s319 = ssub.s32 2048, 2048
          %320 = vsyncadd [#allocation9], %s319
          %s321 = sshll.u32 [#allocation8], 4
          %s322 = int_to_ptr.vmem [resolvable:$true] %s321
          %327 = dma.hbm_to_vmem [thread:$0]  %s3, 2048, %s322, [#allocation9], 128, 128, 8
        $region16: #{tpu_custom_call.1} parent=11 // pred_fallthru
          _
        // Predicated region
        $region17: #{tpu_custom_call.1} parent=11 // pred_check
          %p328 = pneg %p148
        $region18: #{tpu_custom_call.1} parent=11 // pred_check_branch
          %330 = sbr.rel (%p328) target = $region20
        $region19: #{tpu_custom_call.1} parent=11 // pred_region
          _
        $region20: #{tpu_custom_call.1} parent=11 // pred_fallthru
          _
        // Predicated region
        $region21: #{tpu_custom_call.1} parent=11 // pred_check
          %p331 = pneg %p169
        $region22: #{tpu_custom_call.1} parent=11 // pred_check_branch
          %333 = sbr.rel (%p331) target = $region24
        $region23: #{tpu_custom_call.1} parent=11 // pred_region
          %s335 = ssub.s32 2048, 2048
          %336 = vsyncadd [#allocation9], %s335
          %s337 = sshll.u32 [#allocation10], 4
          %s338 = int_to_ptr.vmem [resolvable:$true] %s337
          %343 = dma.hbm_to_vmem [thread:$0]  %s5, 2048, %s338, [#allocation9], 128, 128, 8
        $region24: #{tpu_custom_call.1} parent=11 // pred_fallthru
          _
        // Predicated region
        $region25: #{tpu_custom_call.1} parent=11 // pred_check
          %p344 = pneg %p190
        $region26: #{tpu_custom_call.1} parent=11 // pred_check_branch
          %346 = sbr.rel (%p344) target = $region28
        $region27: #{tpu_custom_call.1} parent=11 // pred_region
          _
        $region28: #{tpu_custom_call.1} parent=11 // pred_fallthru
          _
        // Predicated region
        $region29: #{tpu_custom_call.1} parent=11 // pred_check
          %p347 = pneg %p211
        $region30: #{tpu_custom_call.1} parent=11 // pred_check_branch
          %349 = sbr.rel (%p347) target = $region32
        $region31: #{tpu_custom_call.1} parent=11 // pred_region
          %s351 = ssub.s32 2048, 2048
          %352 = vsyncadd [#allocation12], %s351
          %s353 = sshll.u32 [#allocation11], 4
          %s354 = int_to_ptr.vmem [resolvable:$true] %s353
          %359 = dma.hbm_to_vmem [thread:$0]  %s7, 2048, %s354, [#allocation12], 128, 128, 8
        $region32: #{tpu_custom_call.1} parent=11 // pred_fallthru
          _
        // Predicated region
        $region33: #{tpu_custom_call.1} parent=11 // pred_check
          %p360 = pneg %p232
        $region34: #{tpu_custom_call.1} parent=11 // pred_check_branch
          %362 = sbr.rel (%p360) target = $region36
        $region35: #{tpu_custom_call.1} parent=11 // pred_region
          _
        $region36: #{tpu_custom_call.1} parent=11 // pred_fallthru
          _
        // Predicated region
        $region37: #{tpu_custom_call.1} parent=11 // pred_check
          %p363 = pneg %p253
        $region38: #{tpu_custom_call.1} parent=11 // pred_check_branch
          %365 = sbr.rel (%p363) target = $region40
        $region39: #{tpu_custom_call.1} parent=11 // pred_region
          %s367 = ssub.s32 2048, 2048
          %368 = vsyncadd [#allocation12], %s367
          %s369 = sshll.u32 [#allocation13], 4
          %s370 = int_to_ptr.vmem [resolvable:$true] %s369
          %375 = dma.hbm_to_vmem [thread:$0]  %s9, 2048, %s370, [#allocation12], 128, 128, 8
        $region40: #{tpu_custom_call.1} parent=11 // pred_fallthru
          _
        // Predicated region
        $region41: #{tpu_custom_call.1} parent=11 // pred_check
          %p376 = pneg %p274
        $region42: #{tpu_custom_call.1} parent=11 // pred_check_branch
          %378 = sbr.rel (%p376) target = $region44
        $region43: #{tpu_custom_call.1} parent=11 // pred_region
          _
        $region44: #{tpu_custom_call.1} parent=11 // pred_fallthru
          _
      $region12: #{tpu_custom_call.1} parent=5 // pred_fallthru
        _
      %p379 = scmp.lt.s32.totalorder %s28, 2
      // Predicated region
      $region45: #{tpu_custom_call.1} parent=5 // pred_check
        %p380 = pneg %p379
      $region46: #{tpu_custom_call.1} parent=5 // pred_check_branch
        %382 = sbr.rel (%p380) target = $region48
      $region47: #{tpu_custom_call.1} parent=5 // pred_region
        // Predicated region
        $region49: #{tpu_custom_call.1} parent=47 // pred_check
          %p383 = pneg %p48
        $region50: #{tpu_custom_call.1} parent=47 // pred_check_branch
          %385 = sbr.rel (%p383) target = $region52
        $region51: #{tpu_custom_call.1} parent=47 // pred_region
          %s386 = sand.u32 %s38, 1
          %s387 = scalar_lea.sflag [#allocation3], %s386
          %s388 = sand.u32 %s38, 1
          %s389 = smul.addr %s388, 8
          %s390 = scalar_lea.vmem [#allocation2], %s389
          %s392 = ssub.s32 128, 128
          %393 = vsyncadd %s387, %s392
          %s394 = smul.addr %s28, 128
          %s395 = scalar_lea.hbm %s0, %s394
          %s397 = sshll.u32 %s390, 4
          %s398 = int_to_ptr.vmem [resolvable:$true] %s397
          %400 = dma.hbm_to_vmem [thread:$0]  %s395, 128, %s398, %s387
        $region52: #{tpu_custom_call.1} parent=47 // pred_fallthru
          _
        // Predicated region
        $region53: #{tpu_custom_call.1} parent=47 // pred_check
          %p401 = pneg %p74
        $region54: #{tpu_custom_call.1} parent=47 // pred_check_branch
          %403 = sbr.rel (%p401) target = $region56
        $region55: #{tpu_custom_call.1} parent=47 // pred_region
          %s404 = sand.u32 %s28, 1
          %s405 = scalar_lea.sflag [#allocation6], %s404
          %s406 = sand.u32 %s64, 1
          %s407 = smul.addr %s406, 8
          %s408 = scalar_lea.vmem [#allocation5], %s407
          %s410 = ssub.s32 128, 128
          %411 = vsyncadd %s405, %s410
          %s412 = smul.addr %s28, 128
          %s413 = scalar_lea.hbm %s1, %s412
          %s415 = sshll.u32 %s408, 4
          %s416 = int_to_ptr.vmem [resolvable:$true] %s415
          %418 = dma.hbm_to_vmem [thread:$0]  %s413, 128, %s416, %s405
        $region56: #{tpu_custom_call.1} parent=47 // pred_fallthru
          _
        // Predicated region
        $region57: #{tpu_custom_call.1} parent=47 // pred_check
          %p419 = pneg %p100
        $region58: #{tpu_custom_call.1} parent=47 // pred_check_branch
          %421 = sbr.rel (%p419) target = $region60
        $region59: #{tpu_custom_call.1} parent=47 // pred_region
          %s422 = sand.u32 %s28, 1
          %s423 = scalar_lea.sflag [#allocation6], %s422
          %s424 = sand.u32 %s90, 1
          %s425 = smul.addr %s424, 8
          %s426 = scalar_lea.vmem [#allocation7], %s425
          %s428 = ssub.s32 128, 128
          %429 = vsyncadd %s423, %s428
          %s430 = smul.addr %s28, 128
          %s431 = scalar_lea.hbm %s2, %s430
          %s433 = sshll.u32 %s426, 4
          %s434 = int_to_ptr.vmem [resolvable:$true] %s433
          %436 = dma.hbm_to_vmem [thread:$0]  %s431, 128, %s434, %s423
        $region60: #{tpu_custom_call.1} parent=47 // pred_fallthru
          _
      $region48: #{tpu_custom_call.1} parent=5 // pred_fallthru
        _
      %p437 = scmp.le.s32.totalorder 1, %s28
      %p438 = scmp.lt.s32.totalorder %s28, 3
      %p439 = pnand %p437, %p438
      %p440 = pneg %p439
      // Predicated region
      $region61: #{tpu_custom_call.1} parent=5 // pred_check
        _
      $region62: #{tpu_custom_call.1} parent=5 // pred_check_branch
        %442 = sbr.rel (%p439) target = $region64
      $region63: #{tpu_custom_call.1} parent=5 // pred_region
        %s443 = ssub.s32 %s28, 1
        %s444 = sand.u32 %s41, 1
        %s445 = scalar_lea.sflag [#allocation3], %s444
        %s446 = sand.u32 %s41, 1
        %s447 = smul.addr %s446, 8
        %s448 = scalar_lea.vmem [#allocation2], %s447
        // Predicated region
        $region65: #{tpu_custom_call.1} parent=63 // pred_check
          %p449 = pneg %p54
        $region66: #{tpu_custom_call.1} parent=63 // pred_check_branch
          %451 = sbr.rel (%p449) target = $region68
        $region67: #{tpu_custom_call.1} parent=63 // pred_region
          %452 = dma.done %s445, 128
        $region68: #{tpu_custom_call.1} parent=63 // pred_fallthru
          _
        %s453 = sand.u32 %s33, 1
        %s454 = scalar_lea.sflag [#allocation6], %s453
        %s455 = sand.u32 %s67, 1
        %s456 = smul.addr %s455, 8
        %s457 = scalar_lea.vmem [#allocation5], %s456
        // Predicated region
        $region69: #{tpu_custom_call.1} parent=63 // pred_check
          %p458 = pneg %p80
        $region70: #{tpu_custom_call.1} parent=63 // pred_check_branch
          %460 = sbr.rel (%p458) target = $region72
        $region71: #{tpu_custom_call.1} parent=63 // pred_region
          %461 = dma.done %s454, 128
        $region72: #{tpu_custom_call.1} parent=63 // pred_fallthru
          _
        %s462 = sand.u32 %s33, 1
        %s463 = scalar_lea.sflag [#allocation6], %s462
        %s464 = sand.u32 %s93, 1
        %s465 = smul.addr %s464, 8
        %s466 = scalar_lea.vmem [#allocation7], %s465
        // Predicated region
        $region73: #{tpu_custom_call.1} parent=63 // pred_check
          %p467 = pneg %p106
        $region74: #{tpu_custom_call.1} parent=63 // pred_check_branch
          %469 = sbr.rel (%p467) target = $region76
        $region75: #{tpu_custom_call.1} parent=63 // pred_region
          %470 = dma.done %s463, 128
        $region76: #{tpu_custom_call.1} parent=63 // pred_fallthru
          _
        // Predicated region
        $region77: #{tpu_custom_call.1} parent=63 // pred_check
          %p471 = pneg %p127
        $region78: #{tpu_custom_call.1} parent=63 // pred_check_branch
          %473 = sbr.rel (%p471) target = $region80
        $region79: #{tpu_custom_call.1} parent=63 // pred_region
          %474 = dma.done [#allocation9], 2048
        $region80: #{tpu_custom_call.1} parent=63 // pred_fallthru
          _
        // Predicated region
        $region81: #{tpu_custom_call.1} parent=63 // pred_check
          %p475 = pneg %p169
        $region82: #{tpu_custom_call.1} parent=63 // pred_check_branch
          %477 = sbr.rel (%p475) target = $region84
        $region83: #{tpu_custom_call.1} parent=63 // pred_region
          %478 = dma.done [#allocation9], 2048
        $region84: #{tpu_custom_call.1} parent=63 // pred_fallthru
          _
        // Predicated region
        $region85: #{tpu_custom_call.1} parent=63 // pred_check
          %p479 = pneg %p211
        $region86: #{tpu_custom_call.1} parent=63 // pred_check_branch
          %481 = sbr.rel (%p479) target = $region88
        $region87: #{tpu_custom_call.1} parent=63 // pred_region
          %482 = dma.done [#allocation12], 2048
        $region88: #{tpu_custom_call.1} parent=63 // pred_fallthru
          _
        // Predicated region
        $region89: #{tpu_custom_call.1} parent=63 // pred_check
          %p483 = pneg %p253
        $region90: #{tpu_custom_call.1} parent=63 // pred_check_branch
          %485 = sbr.rel (%p483) target = $region92
        $region91: #{tpu_custom_call.1} parent=63 // pred_region
          %486 = dma.done [#allocation12], 2048
        $region92: #{tpu_custom_call.1} parent=63 // pred_fallthru
          _
        %s487 = sand.u32 %s41, 1
        %s488 = scalar_lea.sflag [#allocation3], %s487
        %s489 = sand.u32 %s41, 1
        %s490 = smul.addr %s489, 8
        %s491 = scalar_lea.vmem [#allocation2], %s490
        %p492 = pneg %p54
        %p493 = pneg %p51
        %s494 = sand.u32 %s33, 1
        %s495 = scalar_lea.sflag [#allocation6], %s494
        %s496 = sand.u32 %s67, 1
        %s497 = smul.addr %s496, 8
        %s498 = scalar_lea.vmem [#allocation5], %s497
        %p499 = pneg %p80
        %p500 = pneg %p77
        %s501 = sand.u32 %s33, 1
        %s502 = scalar_lea.sflag [#allocation6], %s501
        %s503 = sand.u32 %s93, 1
        %s504 = smul.addr %s503, 8
        %s505 = scalar_lea.vmem [#allocation7], %s504
        %p506 = pneg %p106
        %p507 = pneg %p103
        %p508 = pneg %p127
        %p509 = pneg %p124
        %p510 = pneg %p148
        %p511 = pneg %p145
        %p512 = pneg %p169
        %p513 = pneg %p166
        %p514 = pneg %p190
        %p515 = pneg %p187
        %p516 = pneg %p211
        %p517 = pneg %p208
        %p518 = pneg %p232
        %p519 = pneg %p229
        %p520 = pneg %p253
        %p521 = pneg %p250
        %p522 = pneg %p274
        %p523 = pneg %p271
        %p524 = pneg %p300
        %p525 = pneg %p297
        %s526 = sand.u32 %s287, 1
        %s527 = scalar_lea.sflag [#allocation4], %s526
        %s528 = sand.u32 %s287, 1
        %s529 = smul.addr %s528, 8
        %s530 = scalar_lea.vmem [#allocation14], %s529
        %v531 = vld [vmem:[%s448] sm:$0xff]
        %v532 = vld [vmem:[#allocation8] sm:$0xff]
        %v533 = vld [vmem:[#allocation8 + $0x8] sm:$0xff]
        %v534 = vld [vmem:[#allocation8 + $0x10] sm:$0xff]
        %v535 = vld [vmem:[#allocation8 + $0x18] sm:$0xff]
        %v536 = vld [vmem:[#allocation8 + $0x20] sm:$0xff]
        %v537 = vld [vmem:[#allocation8 + $0x28] sm:$0xff]
        %v538 = vld [vmem:[#allocation8 + $0x30] sm:$0xff]
        %v539 = vld [vmem:[#allocation8 + $0x38] sm:$0xff]
        %v540 = vld [vmem:[#allocation8 + $0x40] sm:$0xff]
        %v541 = vld [vmem:[#allocation8 + $0x48] sm:$0xff]
        %v542 = vld [vmem:[#allocation8 + $0x50] sm:$0xff]
        %v543 = vld [vmem:[#allocation8 + $0x58] sm:$0xff]
        %v544 = vld [vmem:[#allocation8 + $0x60] sm:$0xff]
        %v545 = vld [vmem:[#allocation8 + $0x68] sm:$0xff]
        %v546 = vld [vmem:[#allocation8 + $0x70] sm:$0xff]
        %v547 = vld [vmem:[#allocation8 + $0x78] sm:$0xff]
        %v548 = vld [vmem:[%s4] sm:$0x1]
        %v550 = vlaneseq
        %v551 = vshrl.u32 %v550, 7
        %v552 = vsub.s32 0, %v551
        %v553 = vrot.slane %v548, %v552
        %555 = vmatprep.subr.mxu0 0.0
        %556 = vmatpush1.msra.mxu0 %v532
        %557 = vmatprep.subr.mxu0 0.0
        %558 = vmatpush1.msra.mxu0 %v533
        %559 = vmatprep.subr.mxu0 0.0
        %560 = vmatpush1.msra.mxu0 %v534
        %561 = vmatprep.subr.mxu0 0.0
        %562 = vmatpush1.msra.mxu0 %v535
        %563 = vmatprep.subr.mxu0 0.0
        %564 = vmatpush1.msra.mxu0 %v536
        %565 = vmatprep.subr.mxu0 0.0
        %566 = vmatpush1.msra.mxu0 %v537
        %567 = vmatprep.subr.mxu0 0.0
        %568 = vmatpush1.msra.mxu0 %v538
        %569 = vmatprep.subr.mxu0 0.0
        %570 = vmatpush1.msra.mxu0 %v539
        %571 = vmatprep.subr.mxu0 0.0
        %572 = vmatpush1.msra.mxu0 %v540
        %573 = vmatprep.subr.mxu0 0.0
        %574 = vmatpush1.msra.mxu0 %v541
        %575 = vmatprep.subr.mxu0 0.0
        %576 = vmatpush1.msra.mxu0 %v542
        %577 = vmatprep.subr.mxu0 0.0
        %578 = vmatpush1.msra.mxu0 %v543
        %579 = vmatprep.subr.mxu0 0.0
        %580 = vmatpush1.msra.mxu0 %v544
        %581 = vmatprep.subr.mxu0 0.0
        %582 = vmatpush1.msra.mxu0 %v545
        %583 = vmatprep.subr.mxu0 0.0
        %584 = vmatpush1.msra.mxu0 %v546
        %585 = vmatprep.subr.mxu0 0.0
        %586 = vmatpush1.msra.mxu0 %v547
        %587 = vmatprep.subr.mxu0 0.0
        %588 = vmatpush1.msra.mxu0 0.0
        %589 = vmatprep.subr.mxu0 0.0
        %590 = vmatpush1.msra.mxu0 0.0
        %591 = vmatprep.subr.mxu0 0.0
        %592 = vmatpush1.msra.mxu0 0.0
        %593 = vmatprep.subr.mxu0 0.0
        %594 = vmatpush1.msra.mxu0 0.0
        %595 = vmatprep.subr.mxu0 0.0
        %596 = vmatpush1.msra.mxu0 0.0
        %597 = vmatprep.subr.mxu0 0.0
        %598 = vmatpush1.msra.mxu0 0.0
        %599 = vmatprep.subr.mxu0 0.0
        %600 = vmatpush1.msra.mxu0 0.0
        %601 = vmatprep.subr.mxu0 0.0
        %602 = vmatpush1.msra.mxu0 0.0
        %603 = vmatprep.subr.mxu0 0.0
        %604 = vmatpush1.msra.mxu0 0.0
        %605 = vmatprep.subr.mxu0 0.0
        %606 = vmatpush1.msra.mxu0 0.0
        %607 = vmatprep.subr.mxu0 0.0
        %608 = vmatpush1.msra.mxu0 0.0
        %609 = vmatprep.subr.mxu0 0.0
        %610 = vmatpush1.msra.mxu0 0.0
        %611 = vmatprep.subr.mxu0 0.0
        %612 = vmatpush1.msra.mxu0 0.0
        %613 = vmatprep.subr.mxu0 0.0
        %614 = vmatpush1.msra.mxu0 0.0
        %615 = vmatprep.subr.mxu0 0.0
        %616 = vmatpush1.msra.mxu0 0.0
        %617 = vmatprep.subr.mxu0 0.0
        %618 = vmatpush1.msra.mxu0 0.0
        %619 = vmatprep.mubr.f32.mxu0 0.0
        %620 = vmatmul.mubr.f32.gmra.mrb[0].mxu0 %v531
        %v621 = vpop.f32.mrb[0].mxu0
        %v622 = vadd.f32 %v553, %v621
        %v623 = vpop.f32.mrb[0].mxu0
        %624 = vdwg.mxu0
        %v625 = vld [vmem:[%s457] sm:$0xff]
        %v626 = vld [vmem:[#allocation10] sm:$0xff]
        %v627 = vld [vmem:[#allocation10 + $0x8] sm:$0xff]
        %v628 = vld [vmem:[#allocation10 + $0x10] sm:$0xff]
        %v629 = vld [vmem:[#allocation10 + $0x18] sm:$0xff]
        %v630 = vld [vmem:[#allocation10 + $0x20] sm:$0xff]
        %v631 = vld [vmem:[#allocation10 + $0x28] sm:$0xff]
        %v632 = vld [vmem:[#allocation10 + $0x30] sm:$0xff]
        %v633 = vld [vmem:[#allocation10 + $0x38] sm:$0xff]
        %v634 = vld [vmem:[#allocation10 + $0x40] sm:$0xff]
        %v635 = vld [vmem:[#allocation10 + $0x48] sm:$0xff]
        %v636 = vld [vmem:[#allocation10 + $0x50] sm:$0xff]
        %v637 = vld [vmem:[#allocation10 + $0x58] sm:$0xff]
        %v638 = vld [vmem:[#allocation10 + $0x60] sm:$0xff]
        %v639 = vld [vmem:[#allocation10 + $0x68] sm:$0xff]
        %v640 = vld [vmem:[#allocation10 + $0x70] sm:$0xff]
        %v641 = vld [vmem:[#allocation10 + $0x78] sm:$0xff]
        %v642 = vld [vmem:[%s6] sm:$0x1]
        %v644 = vlaneseq
        %v645 = vshrl.u32 %v644, 7
        %v646 = vsub.s32 0, %v645
        %v647 = vrot.slane %v642, %v646
        %649 = vmatprep.subr.mxu0 0.0
        %650 = vmatpush1.msra.mxu0 %v626
        %651 = vmatprep.subr.mxu0 0.0
        %652 = vmatpush1.msra.mxu0 %v627
        %653 = vmatprep.subr.mxu0 0.0
        %654 = vmatpush1.msra.mxu0 %v628
        %655 = vmatprep.subr.mxu0 0.0
        %656 = vmatpush1.msra.mxu0 %v629
        %657 = vmatprep.subr.mxu0 0.0
        %658 = vmatpush1.msra.mxu0 %v630
        %659 = vmatprep.subr.mxu0 0.0
        %660 = vmatpush1.msra.mxu0 %v631
        %661 = vmatprep.subr.mxu0 0.0
        %662 = vmatpush1.msra.mxu0 %v632
        %663 = vmatprep.subr.mxu0 0.0
        %664 = vmatpush1.msra.mxu0 %v633
        %665 = vmatprep.subr.mxu0 0.0
        %666 = vmatpush1.msra.mxu0 %v634
        %667 = vmatprep.subr.mxu0 0.0
        %668 = vmatpush1.msra.mxu0 %v635
        %669 = vmatprep.subr.mxu0 0.0
        %670 = vmatpush1.msra.mxu0 %v636
        %671 = vmatprep.subr.mxu0 0.0
        %672 = vmatpush1.msra.mxu0 %v637
        %673 = vmatprep.subr.mxu0 0.0
        %674 = vmatpush1.msra.mxu0 %v638
        %675 = vmatprep.subr.mxu0 0.0
        %676 = vmatpush1.msra.mxu0 %v639
        %677 = vmatprep.subr.mxu0 0.0
        %678 = vmatpush1.msra.mxu0 %v640
        %679 = vmatprep.subr.mxu0 0.0
        %680 = vmatpush1.msra.mxu0 %v641
        %681 = vmatprep.subr.mxu0 0.0
        %682 = vmatpush1.msra.mxu0 0.0
        %683 = vmatprep.subr.mxu0 0.0
        %684 = vmatpush1.msra.mxu0 0.0
        %685 = vmatprep.subr.mxu0 0.0
        %686 = vmatpush1.msra.mxu0 0.0
        %687 = vmatprep.subr.mxu0 0.0
        %688 = vmatpush1.msra.mxu0 0.0
        %689 = vmatprep.subr.mxu0 0.0
        %690 = vmatpush1.msra.mxu0 0.0
        %691 = vmatprep.subr.mxu0 0.0
        %692 = vmatpush1.msra.mxu0 0.0
        %693 = vmatprep.subr.mxu0 0.0
        %694 = vmatpush1.msra.mxu0 0.0
        %695 = vmatprep.subr.mxu0 0.0
        %696 = vmatpush1.msra.mxu0 0.0
        %697 = vmatprep.subr.mxu0 0.0
        %698 = vmatpush1.msra.mxu0 0.0
        %699 = vmatprep.subr.mxu0 0.0
        %700 = vmatpush1.msra.mxu0 0.0
        %701 = vmatprep.subr.mxu0 0.0
        %702 = vmatpush1.msra.mxu0 0.0
        %703 = vmatprep.subr.mxu0 0.0
        %704 = vmatpush1.msra.mxu0 0.0
        %705 = vmatprep.subr.mxu0 0.0
        %706 = vmatpush1.msra.mxu0 0.0
        %707 = vmatprep.subr.mxu0 0.0
        %708 = vmatpush1.msra.mxu0 0.0
        %709 = vmatprep.subr.mxu0 0.0
        %710 = vmatpush1.msra.mxu0 0.0
        %711 = vmatprep.subr.mxu0 0.0
        %712 = vmatpush1.msra.mxu0 0.0
        %713 = vmatprep.mubr.f32.mxu0 0.0
        %714 = vmatmul.mubr.f32.gmra.mrb[0].mxu0 %v625
        %v715 = vpop.f32.mrb[0].mxu0
        %v716 = vadd.f32 %v647, %v715
        %v717 = vpop.f32.mrb[0].mxu0
        %718 = vdwg.mxu0
        %v719 = vld [vmem:[%s466] sm:$0xff]
        %v720 = vld [vmem:[#allocation11] sm:$0xff]
        %v721 = vld [vmem:[#allocation11 + $0x8] sm:$0xff]
        %v722 = vld [vmem:[#allocation11 + $0x10] sm:$0xff]
        %v723 = vld [vmem:[#allocation11 + $0x18] sm:$0xff]
        %v724 = vld [vmem:[#allocation11 + $0x20] sm:$0xff]
        %v725 = vld [vmem:[#allocation11 + $0x28] sm:$0xff]
        %v726 = vld [vmem:[#allocation11 + $0x30] sm:$0xff]
        %v727 = vld [vmem:[#allocation11 + $0x38] sm:$0xff]
        %v728 = vld [vmem:[#allocation11 + $0x40] sm:$0xff]
        %v729 = vld [vmem:[#allocation11 + $0x48] sm:$0xff]
        %v730 = vld [vmem:[#allocation11 + $0x50] sm:$0xff]
        %v731 = vld [vmem:[#allocation11 + $0x58] sm:$0xff]
        %v732 = vld [vmem:[#allocation11 + $0x60] sm:$0xff]
        %v733 = vld [vmem:[#allocation11 + $0x68] sm:$0xff]
        %v734 = vld [vmem:[#allocation11 + $0x70] sm:$0xff]
        %v735 = vld [vmem:[#allocation11 + $0x78] sm:$0xff]
        %v736 = vld [vmem:[%s8] sm:$0x1]
        %v738 = vlaneseq
        %v739 = vshrl.u32 %v738, 7
        %v740 = vsub.s32 0, %v739
        %v741 = vrot.slane %v736, %v740
        %743 = vmatprep.subr.mxu0 0.0
        %744 = vmatpush1.msra.mxu0 %v720
        %745 = vmatprep.subr.mxu0 0.0
        %746 = vmatpush1.msra.mxu0 %v721
        %747 = vmatprep.subr.mxu0 0.0
        %748 = vmatpush1.msra.mxu0 %v722
        %749 = vmatprep.subr.mxu0 0.0
        %750 = vmatpush1.msra.mxu0 %v723
        %751 = vmatprep.subr.mxu0 0.0
        %752 = vmatpush1.msra.mxu0 %v724
        %753 = vmatprep.subr.mxu0 0.0
        %754 = vmatpush1.msra.mxu0 %v725
        %755 = vmatprep.subr.mxu0 0.0
        %756 = vmatpush1.msra.mxu0 %v726
        %757 = vmatprep.subr.mxu0 0.0
        %758 = vmatpush1.msra.mxu0 %v727
        %759 = vmatprep.subr.mxu0 0.0
        %760 = vmatpush1.msra.mxu0 %v728
        %761 = vmatprep.subr.mxu0 0.0
        %762 = vmatpush1.msra.mxu0 %v729
        %763 = vmatprep.subr.mxu0 0.0
        %764 = vmatpush1.msra.mxu0 %v730
        %765 = vmatprep.subr.mxu0 0.0
        %766 = vmatpush1.msra.mxu0 %v731
        %767 = vmatprep.subr.mxu0 0.0
        %768 = vmatpush1.msra.mxu0 %v732
        %769 = vmatprep.subr.mxu0 0.0
        %770 = vmatpush1.msra.mxu0 %v733
        %771 = vmatprep.subr.mxu0 0.0
        %772 = vmatpush1.msra.mxu0 %v734
        %773 = vmatprep.subr.mxu0 0.0
        %774 = vmatpush1.msra.mxu0 %v735
        %775 = vmatprep.subr.mxu0 0.0
        %776 = vmatpush1.msra.mxu0 0.0
        %777 = vmatprep.subr.mxu0 0.0
        %778 = vmatpush1.msra.mxu0 0.0
        %779 = vmatprep.subr.mxu0 0.0
        %780 = vmatpush1.msra.mxu0 0.0
        %781 = vmatprep.subr.mxu0 0.0
        %782 = vmatpush1.msra.mxu0 0.0
        %783 = vmatprep.subr.mxu0 0.0
        %784 = vmatpush1.msra.mxu0 0.0
        %785 = vmatprep.subr.mxu0 0.0
        %786 = vmatpush1.msra.mxu0 0.0
        %787 = vmatprep.subr.mxu0 0.0
        %788 = vmatpush1.msra.mxu0 0.0
        %789 = vmatprep.subr.mxu0 0.0
        %790 = vmatpush1.msra.mxu0 0.0
        %791 = vmatprep.subr.mxu0 0.0
        %792 = vmatpush1.msra.mxu0 0.0
        %793 = vmatprep.subr.mxu0 0.0
        %794 = vmatpush1.msra.mxu0 0.0
        %795 = vmatprep.subr.mxu0 0.0
        %796 = vmatpush1.msra.mxu0 0.0
        %797 = vmatprep.subr.mxu0 0.0
        %798 = vmatpush1.msra.mxu0 0.0
        %799 = vmatprep.subr.mxu0 0.0
        %800 = vmatpush1.msra.mxu0 0.0
        %801 = vmatprep.subr.mxu0 0.0
        %802 = vmatpush1.msra.mxu0 0.0
        %803 = vmatprep.subr.mxu0 0.0
        %804 = vmatpush1.msra.mxu0 0.0
        %805 = vmatprep.subr.mxu0 0.0
        %806 = vmatpush1.msra.mxu0 0.0
        %807 = vmatprep.mubr.f32.mxu0 0.0
        %808 = vmatmul.mubr.f32.gmra.mrb[0].mxu0 %v719
        %v809 = vpop.f32.mrb[0].mxu0
        %v810 = vadd.f32 %v741, %v809
        %v811 = vpop.f32.mrb[0].mxu0
        %812 = vdwg.mxu0
        %v813 = vmul.f32 %v622, %v716
        %v814 = vmul.f32 %v813, %v810
        %v815 = vld [vmem:[#allocation13] sm:$0xff]
        %v816 = vld [vmem:[#allocation13 + $0x8] sm:$0xff]
        %v817 = vld [vmem:[#allocation13 + $0x10] sm:$0xff]
        %v818 = vld [vmem:[#allocation13 + $0x18] sm:$0xff]
        %v819 = vld [vmem:[#allocation13 + $0x20] sm:$0xff]
        %v820 = vld [vmem:[#allocation13 + $0x28] sm:$0xff]
        %v821 = vld [vmem:[#allocation13 + $0x30] sm:$0xff]
        %v822 = vld [vmem:[#allocation13 + $0x38] sm:$0xff]
        %v823 = vld [vmem:[#allocation13 + $0x40] sm:$0xff]
        %v824 = vld [vmem:[#allocation13 + $0x48] sm:$0xff]
        %v825 = vld [vmem:[#allocation13 + $0x50] sm:$0xff]
        %v826 = vld [vmem:[#allocation13 + $0x58] sm:$0xff]
        %v827 = vld [vmem:[#allocation13 + $0x60] sm:$0xff]
        %v828 = vld [vmem:[#allocation13 + $0x68] sm:$0xff]
        %v829 = vld [vmem:[#allocation13 + $0x70] sm:$0xff]
        %v830 = vld [vmem:[#allocation13 + $0x78] sm:$0xff]
        %v831 = vld [vmem:[%s10] sm:$0x1]
        %v833 = vlaneseq
        %v834 = vshrl.u32 %v833, 7
        %v835 = vsub.s32 0, %v834
        %v836 = vrot.slane %v831, %v835
        %838 = vmatprep.subr.mxu0 0.0
        %839 = vmatpush1.msra.mxu0 %v815
        %840 = vmatprep.subr.mxu0 0.0
        %841 = vmatpush1.msra.mxu0 %v816
        %842 = vmatprep.subr.mxu0 0.0
        %843 = vmatpush1.msra.mxu0 %v817
        %844 = vmatprep.subr.mxu0 0.0
        %845 = vmatpush1.msra.mxu0 %v818
        %846 = vmatprep.subr.mxu0 0.0
        %847 = vmatpush1.msra.mxu0 %v819
        %848 = vmatprep.subr.mxu0 0.0
        %849 = vmatpush1.msra.mxu0 %v820
        %850 = vmatprep.subr.mxu0 0.0
        %851 = vmatpush1.msra.mxu0 %v821
        %852 = vmatprep.subr.mxu0 0.0
        %853 = vmatpush1.msra.mxu0 %v822
        %854 = vmatprep.subr.mxu0 0.0
        %855 = vmatpush1.msra.mxu0 %v823
        %856 = vmatprep.subr.mxu0 0.0
        %857 = vmatpush1.msra.mxu0 %v824
        %858 = vmatprep.subr.mxu0 0.0
        %859 = vmatpush1.msra.mxu0 %v825
        %860 = vmatprep.subr.mxu0 0.0
        %861 = vmatpush1.msra.mxu0 %v826
        %862 = vmatprep.subr.mxu0 0.0
        %863 = vmatpush1.msra.mxu0 %v827
        %864 = vmatprep.subr.mxu0 0.0
        %865 = vmatpush1.msra.mxu0 %v828
        %866 = vmatprep.subr.mxu0 0.0
        %867 = vmatpush1.msra.mxu0 %v829
        %868 = vmatprep.subr.mxu0 0.0
        %869 = vmatpush1.msra.mxu0 %v830
        %870 = vmatprep.subr.mxu0 0.0
        %871 = vmatpush1.msra.mxu0 0.0
        %872 = vmatprep.subr.mxu0 0.0
        %873 = vmatpush1.msra.mxu0 0.0
        %874 = vmatprep.subr.mxu0 0.0
        %875 = vmatpush1.msra.mxu0 0.0
        %876 = vmatprep.subr.mxu0 0.0
        %877 = vmatpush1.msra.mxu0 0.0
        %878 = vmatprep.subr.mxu0 0.0
        %879 = vmatpush1.msra.mxu0 0.0
        %880 = vmatprep.subr.mxu0 0.0
        %881 = vmatpush1.msra.mxu0 0.0
        %882 = vmatprep.subr.mxu0 0.0
        %883 = vmatpush1.msra.mxu0 0.0
        %884 = vmatprep.subr.mxu0 0.0
        %885 = vmatpush1.msra.mxu0 0.0
        %886 = vmatprep.subr.mxu0 0.0
        %887 = vmatpush1.msra.mxu0 0.0
        %888 = vmatprep.subr.mxu0 0.0
        %889 = vmatpush1.msra.mxu0 0.0
        %890 = vmatprep.subr.mxu0 0.0
        %891 = vmatpush1.msra.mxu0 0.0
        %892 = vmatprep.subr.mxu0 0.0
        %893 = vmatpush1.msra.mxu0 0.0
        %894 = vmatprep.subr.mxu0 0.0
        %895 = vmatpush1.msra.mxu0 0.0
        %896 = vmatprep.subr.mxu0 0.0
        %897 = vmatpush1.msra.mxu0 0.0
        %898 = vmatprep.subr.mxu0 0.0
        %899 = vmatpush1.msra.mxu0 0.0
        %900 = vmatprep.subr.mxu0 0.0
        %901 = vmatpush1.msra.mxu0 0.0
        %902 = vmatprep.mubr.f32.mxu0 0.0
        %903 = vmatmul.mubr.f32.gmra.mrb[0].mxu0 %v814
        %v904 = vpop.f32.mrb[0].mxu0
        %v905 = vadd.f32 %v836, %v904
        %v906 = vpop.f32.mrb[0].mxu0
        %907 = vdwg.mxu0
        %v908 = vmax.f32 %v905, 0.0
        %v909 = vadd.f32 %v622, %v908
        %910 = vst [vmem:[%s530] sm:$0xff] %v909
        %s911 = sand.u32 %s287, 1
        %s912 = scalar_lea.sflag [#allocation4], %s911
        %s913 = sand.u32 %s287, 1
        %s914 = smul.addr %s913, 8
        %s915 = scalar_lea.vmem [#allocation14], %s914
        // Predicated region
        $region93: #{tpu_custom_call.1} parent=63 // pred_check
          %p916 = pneg %p297
        $region94: #{tpu_custom_call.1} parent=63 // pred_check_branch
          %918 = sbr.rel (%p916) target = $region96
        $region95: #{tpu_custom_call.1} parent=63 // pred_region
          %s920 = ssub.s32 128, 128
          %921 = vsyncadd %s912, %s920
          %s922 = smul.addr %s33, 128
          %s923 = scalar_lea.hbm %s11, %s922
          %s925 = sshll.u32 %s915, 4
          %s926 = int_to_ptr.vmem [resolvable:$true] %s925
          %928 = dma.vmem_to_hbm [thread:$0]  %s926, 128, %s923, %s912
        $region96: #{tpu_custom_call.1} parent=63 // pred_fallthru
          _
      $region64: #{tpu_custom_call.1} parent=5 // pred_fallthru
        _
      %p929 = scmp.le.s32.totalorder 2, %s28
      // Predicated region
      $region97: #{tpu_custom_call.1} parent=5 // pred_check
        %p930 = pneg %p929
      $region98: #{tpu_custom_call.1} parent=5 // pred_check_branch
        %932 = sbr.rel (%p930) target = $region100
      $region99: #{tpu_custom_call.1} parent=5 // pred_region
        %s933 = ssub.s32 %s28, 2
        // Predicated region
        $region101: #{tpu_custom_call.1} parent=99 // pred_check
          %p934 = pneg %p303
        $region102: #{tpu_custom_call.1} parent=99 // pred_check_branch
          %936 = sbr.rel (%p934) target = $region104
        $region103: #{tpu_custom_call.1} parent=99 // pred_region
          %s937 = sand.u32 %s288, 1
          %s938 = scalar_lea.sflag [#allocation4], %s937
          %s939 = sand.u32 %s288, 1
          %s940 = smul.addr %s939, 8
          %s941 = scalar_lea.vmem [#allocation14], %s940
          %942 = dma.done %s938, 128
        $region104: #{tpu_custom_call.1} parent=99 // pred_fallthru
          _
      $region100: #{tpu_custom_call.1} parent=5 // pred_fallthru
        _
    $region6: #{tpu_custom_call.1} parent=1 // loop_footer
      %s32 = sadd.s32 1, %s28
    $region7: #{tpu_custom_call.1} parent=1 // loop_footer_branch
      %27 = sbr.rel target = $region3
    $region8: #{tpu_custom_call.1} parent=1 // loop_exit
      _
    %943 = vsyncpa [#allocation3], 1
    %s944 = scalar_lea.sflag [#allocation3], 1
    %945 = vsyncpa %s944, 1
    %946 = vsyncpa [#allocation6], 1
    %s947 = scalar_lea.sflag [#allocation6], 1
    %948 = vsyncpa %s947, 1
    %949 = vsyncpa [#allocation9], 1
    %950 = vsyncpa [#allocation12], 1
    %951 = vsyncpa [#allocation4], 1
    %s952 = scalar_lea.sflag [#allocation4], 1
    %953 = vsyncpa %s952, 1

</llo_original>
